<compile_context>
chip_gen: v6e
topology: v6e:2x2x1
jax: 0.10.0
libtpu: 0.0.40
codegen_flags: <defaults>
</compile_context>

<pallas_src>
import jax
import jax.numpy as jnp
from jax.experimental import pallas as pl
from jax.experimental.pallas import tpu as pltpu


def simple_nn_kernel(w1_ref, b1_ref, w2_ref, b2_ref, x_ref, o_ref):
    # x_ref: (2, TN) VMEM tile, batch on lanes.
    # w1_ref: (10,) SMEM  = fc1.weight (5,2) flattened row-major
    # b1_ref: (5,)  SMEM  = fc1.bias
    # w2_ref: (5,)  SMEM  = fc2.weight (1,5) flattened
    # b2_ref: (1,)  SMEM  = fc2.bias
    x0 = x_ref[0:1, :]  # (1, TN) feature 0
    x1 = x_ref[1:2, :]  # (1, TN) feature 1

    acc = None
    # Fully unrolled over the 5 hidden units: pure VPU FMAs with SMEM-scalar
    # broadcasts; ReLU fused per hidden row.
    for j in range(5):
        h = w1_ref[2 * j + 0] * x0 + w1_ref[2 * j + 1] * x1 + b1_ref[j]
        h = jnp.maximum(h, 0.0)
        term = w2_ref[j] * h
        acc = term if acc is None else acc + term

    o_ref[...] = (acc + b2_ref[0]).astype(o_ref.dtype)  # (1, TN)


def simple_nn_forward(x, w1, b1, w2, b2, *, block_n=1024):
    """x: (N, 2) f32; w1: (5, 2); b1: (5,); w2: (1, 5); b2: (1,). Returns (N, 1)."""
    n = x.shape[0]

    # Lane-dense tiling of the batch axis: tile is a multiple of 128 lanes.
    n_128 = pl.cdiv(n, 128) * 128
    tn = min(block_n, n_128)
    n_pad = pl.cdiv(n, tn) * tn
    grid = (n_pad // tn,)

    # Layout glue (plain JAX): transpose to (features, N) and zero-pad lanes.
    x_t = jnp.pad(x.T, ((0, 0), (0, n_pad - n)))        # (2, n_pad)

    # Flatten params for SMEM residency.
    w1_flat = w1.reshape(-1).astype(jnp.float32)          # (10,)
    b1_flat = b1.reshape(-1).astype(jnp.float32)          # (5,)
    w2_flat = w2.reshape(-1).astype(jnp.float32)          # (5,)
    b2_flat = b2.reshape(-1).astype(jnp.float32)          # (1,)

    smem = pl.BlockSpec(memory_space=pltpu.MemorySpace.SMEM)

    out = pl.pallas_call(
        simple_nn_kernel,
        out_shape=jax.ShapeDtypeStruct((1, n_pad), jnp.float32),
        grid=grid,
        in_specs=[
            smem,  # w1
            smem,  # b1
            smem,  # w2
            smem,  # b2
            pl.BlockSpec((2, tn), lambda i: (0, i)),   # x tile (lane-dense)
        ],
        out_specs=pl.BlockSpec((1, tn), lambda i: (0, i)),
        compiler_params=pltpu.CompilerParams(
            dimension_semantics=("parallel",),
            vmem_limit_bytes=32 * 1024 * 1024,
        ),
    )(w1_flat, b1_flat, w2_flat, b2_flat, x_t)

    # Un-pad and restore the (N, 1) PyTorch-style output.
    return out[0, :n].reshape(n, 1)


def init_params(key):
    """Deterministic init matching PyTorch Linear shapes:
       fc1.weight (5, 2), fc1.bias (5,), fc2.weight (1, 5), fc2.bias (1,).
       Uses uniform(-1/sqrt(fan_in), 1/sqrt(fan_in)) like torch's default."""
    k1, k2, k3, k4 = jax.random.split(key, 4)
    bound1 = 1.0 / jnp.sqrt(2.0)
    w1 = jax.random.uniform(k1, (5, 2), jnp.float32, -bound1, bound1)
    b1 = jax.random.uniform(k2, (5,), jnp.float32, -bound1, bound1)
    bound2 = 1.0 / jnp.sqrt(5.0)
    w2 = jax.random.uniform(k3, (1, 5), jnp.float32, -bound2, bound2)
    b2 = jax.random.uniform(k4, (1,), jnp.float32, -bound2, bound2)
    return w1, b1, w2, b2


def _reference(x, w1, b1, w2, b2):
    return jnp.maximum(x @ w1.T + b1, 0.0) @ w2.T + b2


if __name__ == "__main__":
    key = jax.random.PRNGKey(0)
    kx, kp, kx2 = jax.random.split(key, 3)

    w1, b1, w2, b2 = init_params(kp)

    # Small batch, 2 input features (matches nn.Linear(2, 5)).
    x = jax.random.normal(kx, (8, 2), jnp.float32)
    out = jax.block_until_ready(simple_nn_forward(x, w1, b1, w2, b2))
    ref = _reference(x, w1, b1, w2, b2)
    assert out.shape == (8, 1)
    assert jnp.allclose(out, ref, atol=1e-5, rtol=1e-5)

    # Second check with a batch that exercises a multi-step lane grid
    # (N=300 -> padded to 384 lanes, 3 grid steps of 128).
    x2 = jax.random.normal(kx2, (300, 2), jnp.float32)
    out2 = jax.block_until_ready(simple_nn_forward(x2, w1, b1, w2, b2, block_n=128))
    ref2 = _reference(x2, w1, b1, w2, b2)
    assert out2.shape == (300, 1)
    assert jnp.allclose(out2, ref2, atol=1e-5, rtol=1e-5)

    print("KERNEL_OK")
</pallas_src>

<mosaic_0001>
module attributes {stable_mosaic.version = 11 : i64} {
  func.func @simple_nn_kernel(%arg0: i32, %arg1: memref<10xf32, #tpu.memory_space<smem>>, %arg2: memref<5xf32, #tpu.memory_space<smem>>, %arg3: memref<5xf32, #tpu.memory_space<smem>>, %arg4: memref<1xf32, #tpu.memory_space<smem>>, %arg5: memref<2x128xf32, #tpu.memory_space<vmem>>, %arg6: memref<1x128xf32, #tpu.memory_space<vmem>>) attributes {dimension_semantics = [#tpu.dimension_semantics<parallel>], iteration_bounds = array<i64: 1>, scalar_prefetch = 0 : i64, scratch_operands = 0 : i64, tpu.core_type = #tpu.core_type<tc>, window_params = [{transform_indices = @transform_0, window_bounds = array<i64: 10>}, {transform_indices = @transform_1, window_bounds = array<i64: 5>}, {transform_indices = @transform_2, window_bounds = array<i64: 5>}, {transform_indices = @transform_3, window_bounds = array<i64: 1>}, {transform_indices = @transform_4, window_bounds = array<i64: 2, 128>}, {transform_indices = @transform_5, window_bounds = array<i64: 1, 128>}]} {
    %c0 = arith.constant 0 : index
    %c0_0 = arith.constant 0 : index
    %0 = vector.load %arg5[%c0, %c0_0] : memref<2x128xf32, #tpu.memory_space<vmem>>, vector<1x128xf32>
    %c1 = arith.constant 1 : index
    %c0_1 = arith.constant 0 : index
    %1 = vector.load %arg5[%c1, %c0_1] : memref<2x128xf32, #tpu.memory_space<vmem>>, vector<1x128xf32>
    %c0_2 = arith.constant 0 : index
    %2 = memref.load %arg1[%c0_2] : memref<10xf32, #tpu.memory_space<smem>>
    %3 = vector.broadcast %2 : f32 to vector<1x128xf32>
    %4 = arith.mulf %3, %0 : vector<1x128xf32>
    %c1_3 = arith.constant 1 : index
    %5 = memref.load %arg1[%c1_3] : memref<10xf32, #tpu.memory_space<smem>>
    %6 = vector.broadcast %5 : f32 to vector<1x128xf32>
    %7 = arith.mulf %6, %1 : vector<1x128xf32>
    %8 = arith.addf %4, %7 : vector<1x128xf32>
    %c0_4 = arith.constant 0 : index
    %9 = memref.load %arg2[%c0_4] : memref<5xf32, #tpu.memory_space<smem>>
    %10 = vector.broadcast %9 : f32 to vector<1x128xf32>
    %11 = arith.addf %8, %10 : vector<1x128xf32>
    %cst = arith.constant 0.000000e+00 : f32
    %12 = vector.broadcast %cst : f32 to vector<1x128xf32>
    %13 = arith.maximumf %11, %12 : vector<1x128xf32>
    %c0_5 = arith.constant 0 : index
    %14 = memref.load %arg3[%c0_5] : memref<5xf32, #tpu.memory_space<smem>>
    %15 = vector.broadcast %14 : f32 to vector<1x128xf32>
    %16 = arith.mulf %15, %13 : vector<1x128xf32>
    %c2 = arith.constant 2 : index
    %17 = memref.load %arg1[%c2] : memref<10xf32, #tpu.memory_space<smem>>
    %18 = vector.broadcast %17 : f32 to vector<1x128xf32>
    %19 = arith.mulf %18, %0 : vector<1x128xf32>
    %c3 = arith.constant 3 : index
    %20 = memref.load %arg1[%c3] : memref<10xf32, #tpu.memory_space<smem>>
    %21 = vector.broadcast %20 : f32 to vector<1x128xf32>
    %22 = arith.mulf %21, %1 : vector<1x128xf32>
    %23 = arith.addf %19, %22 : vector<1x128xf32>
    %c1_6 = arith.constant 1 : index
    %24 = memref.load %arg2[%c1_6] : memref<5xf32, #tpu.memory_space<smem>>
    %25 = vector.broadcast %24 : f32 to vector<1x128xf32>
    %26 = arith.addf %23, %25 : vector<1x128xf32>
    %cst_7 = arith.constant 0.000000e+00 : f32
    %27 = vector.broadcast %cst_7 : f32 to vector<1x128xf32>
    %28 = arith.maximumf %26, %27 : vector<1x128xf32>
    %c1_8 = arith.constant 1 : index
    %29 = memref.load %arg3[%c1_8] : memref<5xf32, #tpu.memory_space<smem>>
    %30 = vector.broadcast %29 : f32 to vector<1x128xf32>
    %31 = arith.mulf %30, %28 : vector<1x128xf32>
    %32 = arith.addf %16, %31 : vector<1x128xf32>
    %c4 = arith.constant 4 : index
    %33 = memref.load %arg1[%c4] : memref<10xf32, #tpu.memory_space<smem>>
    %34 = vector.broadcast %33 : f32 to vector<1x128xf32>
    %35 = arith.mulf %34, %0 : vector<1x128xf32>
    %c5 = arith.constant 5 : index
    %36 = memref.load %arg1[%c5] : memref<10xf32, #tpu.memory_space<smem>>
    %37 = vector.broadcast %36 : f32 to vector<1x128xf32>
    %38 = arith.mulf %37, %1 : vector<1x128xf32>
    %39 = arith.addf %35, %38 : vector<1x128xf32>
    %c2_9 = arith.constant 2 : index
    %40 = memref.load %arg2[%c2_9] : memref<5xf32, #tpu.memory_space<smem>>
    %41 = vector.broadcast %40 : f32 to vector<1x128xf32>
    %42 = arith.addf %39, %41 : vector<1x128xf32>
    %cst_10 = arith.constant 0.000000e+00 : f32
    %43 = vector.broadcast %cst_10 : f32 to vector<1x128xf32>
    %44 = arith.maximumf %42, %43 : vector<1x128xf32>
    %c2_11 = arith.constant 2 : index
    %45 = memref.load %arg3[%c2_11] : memref<5xf32, #tpu.memory_space<smem>>
    %46 = vector.broadcast %45 : f32 to vector<1x128xf32>
    %47 = arith.mulf %46, %44 : vector<1x128xf32>
    %48 = arith.addf %32, %47 : vector<1x128xf32>
    %c6 = arith.constant 6 : index
    %49 = memref.load %arg1[%c6] : memref<10xf32, #tpu.memory_space<smem>>
    %50 = vector.broadcast %49 : f32 to vector<1x128xf32>
    %51 = arith.mulf %50, %0 : vector<1x128xf32>
    %c7 = arith.constant 7 : index
    %52 = memref.load %arg1[%c7] : memref<10xf32, #tpu.memory_space<smem>>
    %53 = vector.broadcast %52 : f32 to vector<1x128xf32>
    %54 = arith.mulf %53, %1 : vector<1x128xf32>
    %55 = arith.addf %51, %54 : vector<1x128xf32>
    %c3_12 = arith.constant 3 : index
    %56 = memref.load %arg2[%c3_12] : memref<5xf32, #tpu.memory_space<smem>>
    %57 = vector.broadcast %56 : f32 to vector<1x128xf32>
    %58 = arith.addf %55, %57 : vector<1x128xf32>
    %cst_13 = arith.constant 0.000000e+00 : f32
    %59 = vector.broadcast %cst_13 : f32 to vector<1x128xf32>
    %60 = arith.maximumf %58, %59 : vector<1x128xf32>
    %c3_14 = arith.constant 3 : index
    %61 = memref.load %arg3[%c3_14] : memref<5xf32, #tpu.memory_space<smem>>
    %62 = vector.broadcast %61 : f32 to vector<1x128xf32>
    %63 = arith.mulf %62, %60 : vector<1x128xf32>
    %64 = arith.addf %48, %63 : vector<1x128xf32>
    %c8 = arith.constant 8 : index
    %65 = memref.load %arg1[%c8] : memref<10xf32, #tpu.memory_space<smem>>
    %66 = vector.broadcast %65 : f32 to vector<1x128xf32>
    %67 = arith.mulf %66, %0 : vector<1x128xf32>
    %c9 = arith.constant 9 : index
    %68 = memref.load %arg1[%c9] : memref<10xf32, #tpu.memory_space<smem>>
    %69 = vector.broadcast %68 : f32 to vector<1x128xf32>
    %70 = arith.mulf %69, %1 : vector<1x128xf32>
    %71 = arith.addf %67, %70 : vector<1x128xf32>
    %c4_15 = arith.constant 4 : index
    %72 = memref.load %arg2[%c4_15] : memref<5xf32, #tpu.memory_space<smem>>
    %73 = vector.broadcast %72 : f32 to vector<1x128xf32>
    %74 = arith.addf %71, %73 : vector<1x128xf32>
    %cst_16 = arith.constant 0.000000e+00 : f32
    %75 = vector.broadcast %cst_16 : f32 to vector<1x128xf32>
    %76 = arith.maximumf %74, %75 : vector<1x128xf32>
    %c4_17 = arith.constant 4 : index
    %77 = memref.load %arg3[%c4_17] : memref<5xf32, #tpu.memory_space<smem>>
    %78 = vector.broadcast %77 : f32 to vector<1x128xf32>
    %79 = arith.mulf %78, %76 : vector<1x128xf32>
    %80 = arith.addf %64, %79 : vector<1x128xf32>
    %c0_18 = arith.constant 0 : index
    %81 = memref.load %arg4[%c0_18] : memref<1xf32, #tpu.memory_space<smem>>
    %82 = vector.broadcast %81 : f32 to vector<1x128xf32>
    %83 = arith.addf %80, %82 : vector<1x128xf32>
    %c0_19 = arith.constant 0 : index
    %c0_20 = arith.constant 0 : index
    %84 = vector.load %arg6[%c0_19, %c0_20] : memref<1x128xf32, #tpu.memory_space<vmem>>, vector<1x128xf32>
    tpu.vector_store %arg6[%c0_19, %c0_20], %83 {strides = array<i32>} : memref<1x128xf32, #tpu.memory_space<vmem>>, vector<1x128xf32>,
    return
  }
  func.func @transform_0(%arg0: i32) -> i32 {
    %c0_i32 = arith.constant 0 : i32
    %c0_i32_0 = arith.constant 0 : i32
    return %c0_i32 : i32
  }
  func.func @transform_1(%arg0: i32) -> i32 {
    %c0_i32 = arith.constant 0 : i32
    %c0_i32_0 = arith.constant 0 : i32
    return %c0_i32 : i32
  }
  func.func @transform_2(%arg0: i32) -> i32 {
    %c0_i32 = arith.constant 0 : i32
    %c0_i32_0 = arith.constant 0 : i32
    return %c0_i32 : i32
  }
  func.func @transform_3(%arg0: i32) -> i32 {
    %c0_i32 = arith.constant 0 : i32
    %c0_i32_0 = arith.constant 0 : i32
    return %c0_i32 : i32
  }
  func.func @transform_4(%arg0: i32) -> (i32, i32) {
    %c0_i32 = arith.constant 0 : i32
    %c0_i32_0 = arith.constant 0 : i32
    return %c0_i32, %arg0 : i32, i32
  }
  func.func @transform_5(%arg0: i32) -> (i32, i32) {
    %c0_i32 = arith.constant 0 : i32
    %c0_i32_0 = arith.constant 0 : i32
    return %c0_i32, %arg0 : i32, i32
  }
}

</mosaic_0001>

<llo_original>
// kernel: tpu_custom_call.1
$region0: #{tpu_custom_call.1}
  #allocation0 [shape = 'u32[]', space=smem, size = 0x4, offset = 0x4, fixed_abs, tag = 'smem constant byte address 0x4 - core index']
  #allocation1 [shape = 'u32[144,128]{1,0:T(1,128)}', space=vmem, size = 0x12000, scoped, tag = 'internal scratch']
  #allocation2 [shape = 'f32[1]{0:T(128)S(6)}', space=smem, size = 0x200, scoped, tag = 'scoped memory for tpu_custom_call.1']
  %s0 = inlined_call_operand.vmem [shape: f32[10], index: 0, kind: input, shape index: {}]
  %s1 = inlined_call_operand.hbm [shape: f32[5], index: 1, kind: input, shape index: {}]
  %s2 = inlined_call_operand.vmem [shape: f32[5], index: 2, kind: input, shape index: {}]
  %s3 = inlined_call_operand.<no memory space> [shape: f32[1], index: 3, kind: input, shape index: {}]
  %s4 = inlined_call_operand.vmem [shape: f32[2,128], index: 4, kind: input, shape index: {}]
  %s5 = inlined_call_operand.hbm [shape: f32[1,128], index: 5, kind: output, shape index: {}]
  %s6 = sld [smem:[#allocation0]]
  $region42: #{tpu_custom_call.1} parent=0
    _
  %s8 = ssub.s32 1, %s6
  %s9 = scalar_select 0, %s8, %s6
  %10 = sst [smem:[#allocation2]] %s3
  $region1: #{tpu_custom_call.1} parent=0
    #allocation3 [shape = 'u8[512]{0}', space=smem, size = 0x200, scoped, tag = 'input window, operand 0, single buffered']
    #allocation4 [shape = 's32[1]{0}', space=sflag, size = 0x4, scoped, tag = 'scoped memory for tpu_custom_call.1']
    #allocation5 [shape = 's32[1]{0}', space=sflag, size = 0x4, scoped, tag = 'scoped memory for tpu_custom_call.1']
    #allocation6 [shape = 's32[1]{0}', space=sflag, size = 0x4, scoped, tag = 'scoped memory for tpu_custom_call.1']
    #allocation7 [shape = 'u8[512]{0}', space=smem, size = 0x200, scoped, tag = 'input window, operand 1, single buffered']
    #allocation8 [shape = 'u8[512]{0}', space=smem, size = 0x200, scoped, tag = 'input window, operand 2, single buffered']
    #allocation9 [shape = 's32[1]{0}', space=sflag, size = 0x4, scoped, tag = 'scoped memory for tpu_custom_call.1']
    #allocation10 [shape = 'u8[512]{0}', space=vmem, size = 0x400, scoped, tag = 'output window, operand 0, single buffered']
    %11 = vsyncpa [#allocation6], 0
    %12 = vsyncpa [#allocation5], 0
    %13 = vsyncpa [#allocation9], 0
    %14 = vsyncpa [#allocation4], 0
    // Predicated region
    $region2: #{tpu_custom_call.1} parent=1 // pred_check
      _
    $region3: #{tpu_custom_call.1} parent=1 // pred_check_branch
      %16 = sbr.rel (0) target = $region5
    $region4: #{tpu_custom_call.1} parent=1 // pred_region
      %s18 = ssub.s32 16, 16
      %19 = vsyncadd [#allocation6], %s18
      %s21 = sshll.u32 %s0, 4
      %s22 = int_to_ptr.vmem [resolvable:$true] %s21
      %24 = dma.vmem_to_smem %s22, 16, [#allocation3], [#allocation6]
    $region5: #{tpu_custom_call.1} parent=1 // pred_fallthru
      _
    // Predicated region
    $region6: #{tpu_custom_call.1} parent=1 // pred_check
      _
    $region7: #{tpu_custom_call.1} parent=1 // pred_check_branch
      %26 = sbr.rel (0) target = $region9
    $region8: #{tpu_custom_call.1} parent=1 // pred_region
      %s28 = ssub.s32 16, 16
      %29 = vsyncadd [#allocation5], %s28
      %32 = dma.hbm_to_smem %s1, 16, [#allocation7], [#allocation5]
    $region9: #{tpu_custom_call.1} parent=1 // pred_fallthru
      _
    // Predicated region
    $region10: #{tpu_custom_call.1} parent=1 // pred_check
      _
    $region11: #{tpu_custom_call.1} parent=1 // pred_check_branch
      %34 = sbr.rel (0) target = $region13
    $region12: #{tpu_custom_call.1} parent=1 // pred_region
      %s36 = ssub.s32 16, 16
      %37 = vsyncadd [#allocation9], %s36
      %s39 = sshll.u32 %s2, 4
      %s40 = int_to_ptr.vmem [resolvable:$true] %s39
      %42 = dma.vmem_to_smem %s40, 16, [#allocation8], [#allocation9]
    $region13: #{tpu_custom_call.1} parent=1 // pred_fallthru
      _
    // Predicated region
    $region14: #{tpu_custom_call.1} parent=1 // pred_check
      _
    $region15: #{tpu_custom_call.1} parent=1 // pred_check_branch
      %44 = sbr.rel (0) target = $region17
    $region16: #{tpu_custom_call.1} parent=1 // pred_region
      _
    $region17: #{tpu_custom_call.1} parent=1 // pred_fallthru
      _
    // Predicated region
    $region18: #{tpu_custom_call.1} parent=1 // pred_check
      _
    $region19: #{tpu_custom_call.1} parent=1 // pred_check_branch
      %46 = sbr.rel (0) target = $region21
    $region20: #{tpu_custom_call.1} parent=1 // pred_region
      _
    $region21: #{tpu_custom_call.1} parent=1 // pred_fallthru
      _
    // Predicated region
    $region22: #{tpu_custom_call.1} parent=1 // pred_check
      _
    $region23: #{tpu_custom_call.1} parent=1 // pred_check_branch
      %48 = sbr.rel (0) target = $region25
    $region24: #{tpu_custom_call.1} parent=1 // pred_region
      %49 = dma.done [#allocation6], 16
    $region25: #{tpu_custom_call.1} parent=1 // pred_fallthru
      _
    // Predicated region
    $region26: #{tpu_custom_call.1} parent=1 // pred_check
      _
    $region27: #{tpu_custom_call.1} parent=1 // pred_check_branch
      %51 = sbr.rel (0) target = $region29
    $region28: #{tpu_custom_call.1} parent=1 // pred_region
      %52 = dma.done [#allocation5], 16
    $region29: #{tpu_custom_call.1} parent=1 // pred_fallthru
      _
    // Predicated region
    $region30: #{tpu_custom_call.1} parent=1 // pred_check
      _
    $region31: #{tpu_custom_call.1} parent=1 // pred_check_branch
      %54 = sbr.rel (0) target = $region33
    $region32: #{tpu_custom_call.1} parent=1 // pred_region
      %55 = dma.done [#allocation9], 16
    $region33: #{tpu_custom_call.1} parent=1 // pred_fallthru
      _
    %56 = sfence
    %v57 = vld [vmem:[%s4] sm:$0x1]
    %v58 = vld [vmem:[%s4 + $0x1] sm:$0x1]
    %s59 = sld [smem:[#allocation3]]
    %v60 = vstv %s59
    %v61 = vmul.f32 %v60, %v57
    %s62 = sld [smem:[#allocation3 + $0x1]]
    %v63 = vstv %s62
    %v64 = vmul.f32 %v63, %v58
    %v65 = vadd.f32 %v61, %v64
    %s66 = sld [smem:[#allocation7]]
    %v67 = vstv %s66
    %v68 = vadd.f32 %v65, %v67
    %v69 = vmax.f32 %v68, 0.0
    %s70 = sld [smem:[#allocation8]]
    %v71 = vstv %s70
    %v72 = vmul.f32 %v71, %v69
    %s73 = sld [smem:[#allocation3 + $0x2]]
    %v74 = vstv %s73
    %v75 = vmul.f32 %v74, %v57
    %s76 = sld [smem:[#allocation3 + $0x3]]
    %v77 = vstv %s76
    %v78 = vmul.f32 %v77, %v58
    %v79 = vadd.f32 %v75, %v78
    %s80 = sld [smem:[#allocation7 + $0x1]]
    %v81 = vstv %s80
    %v82 = vadd.f32 %v79, %v81
    %v83 = vmax.f32 %v82, 0.0
    %s84 = sld [smem:[#allocation8 + $0x1]]
    %v85 = vstv %s84
    %v86 = vmul.f32 %v85, %v83
    %v87 = vadd.f32 %v72, %v86
    %s88 = sld [smem:[#allocation3 + $0x4]]
    %v89 = vstv %s88
    %v90 = vmul.f32 %v89, %v57
    %s91 = sld [smem:[#allocation3 + $0x5]]
    %v92 = vstv %s91
    %v93 = vmul.f32 %v92, %v58
    %v94 = vadd.f32 %v90, %v93
    %s95 = sld [smem:[#allocation7 + $0x2]]
    %v96 = vstv %s95
    %v97 = vadd.f32 %v94, %v96
    %v98 = vmax.f32 %v97, 0.0
    %s99 = sld [smem:[#allocation8 + $0x2]]
    %v100 = vstv %s99
    %v101 = vmul.f32 %v100, %v98
    %v102 = vadd.f32 %v87, %v101
    %s103 = sld [smem:[#allocation3 + $0x6]]
    %v104 = vstv %s103
    %v105 = vmul.f32 %v104, %v57
    %s106 = sld [smem:[#allocation3 + $0x7]]
    %v107 = vstv %s106
    %v108 = vmul.f32 %v107, %v58
    %v109 = vadd.f32 %v105, %v108
    %s110 = sld [smem:[#allocation7 + $0x3]]
    %v111 = vstv %s110
    %v112 = vadd.f32 %v109, %v111
    %v113 = vmax.f32 %v112, 0.0
    %s114 = sld [smem:[#allocation8 + $0x3]]
    %v115 = vstv %s114
    %v116 = vmul.f32 %v115, %v113
    %v117 = vadd.f32 %v102, %v116
    %s118 = sld [smem:[#allocation3 + $0x8]]
    %v119 = vstv %s118
    %v120 = vmul.f32 %v119, %v57
    %s121 = sld [smem:[#allocation3 + $0x9]]
    %v122 = vstv %s121
    %v123 = vmul.f32 %v122, %v58
    %v124 = vadd.f32 %v120, %v123
    %s125 = sld [smem:[#allocation7 + $0x4]]
    %v126 = vstv %s125
    %v127 = vadd.f32 %v124, %v126
    %v128 = vmax.f32 %v127, 0.0
    %s129 = sld [smem:[#allocation8 + $0x4]]
    %v130 = vstv %s129
    %v131 = vmul.f32 %v130, %v128
    %v132 = vadd.f32 %v117, %v131
    %s133 = sld [smem:[#allocation2]]
    %v134 = vstv %s133
    %v135 = vadd.f32 %v132, %v134
    %136 = vst [vmem:[#allocation10] sm:$0x1] %v135
    // Predicated region
    $region34: #{tpu_custom_call.1} parent=1 // pred_check
      _
    $region35: #{tpu_custom_call.1} parent=1 // pred_check_branch
      %138 = sbr.rel (0) target = $region37
    $region36: #{tpu_custom_call.1} parent=1 // pred_region
      %s140 = ssub.s32 16, 16
      %141 = vsyncadd [#allocation4], %s140
      %s143 = sshll.u32 [#allocation10], 4
      %s144 = int_to_ptr.vmem [resolvable:$true] %s143
      %146 = dma.vmem_to_hbm [thread:$0]  %s144, 16, %s5, [#allocation4]
    $region37: #{tpu_custom_call.1} parent=1 // pred_fallthru
      _
    // Predicated region
    $region38: #{tpu_custom_call.1} parent=1 // pred_check
      _
    $region39: #{tpu_custom_call.1} parent=1 // pred_check_branch
      %148 = sbr.rel (0) target = $region41
    $region40: #{tpu_custom_call.1} parent=1 // pred_region
      %149 = dma.done [#allocation4], 16
    $region41: #{tpu_custom_call.1} parent=1 // pred_fallthru
      _
    %150 = vsyncpa [#allocation4], 1
    %151 = vsyncpa [#allocation5], 1
    %152 = vsyncpa [#allocation6], 1
    %153 = vsyncpa [#allocation9], 1

</llo_original>
